<compile_context>
chip_gen: v7x
topology: tpu7x:2x2x1
jax: 0.10.0
libtpu: 0.0.40
codegen_flags: <defaults>
</compile_context>

<pallas_src>
import jax
import jax.numpy as jnp
from jax.experimental import pallas as pl
from jax.experimental.pallas import tpu as pltpu


def _round_up(x, m):
    return ((x + m - 1) // m) * m


def _pick_batch_tile(B, D):
    """Largest batch tile (multiple of 8) whose double-buffered activations
    fit comfortably in VMEM alongside the resident weights."""
    budget = 6 << 20                                   # ~6 MiB for streamed tiles
    tb = budget // max(2 * (D + 1) * 4, 1)
    tb = max(8, min(1024, (tb // 8) * 8))
    if B <= tb:
        tb = _round_up(max(B, 1), 8)
    return tb


def _distance_classifier_kernel(x1_ref, x2_ref, w1a_ref, w1b_ref, b1_ref,
                                w2_ref, b2_ref, o_ref):
    """Fused fc1 -> relu -> fc2 -> sigmoid for one batch tile.

    x1_ref : [TB, D1]   first input tile
    x2_ref : [TB, D2]   second input tile
    w1a_ref: [D1, H]    fc1 weight rows matching input1 (pre-transposed)
    w1b_ref: [D2, H]    fc1 weight rows matching input2 (pre-transposed)
    b1_ref : [1, H]     fc1 bias
    w2_ref : [1, H]     fc2 weight as a row vector
    b2_ref : [1, 1]     fc2 bias (SMEM scalar)
    o_ref  : [TB, 1]    sigmoid output tile
    """
    # fc1 on the split inputs == fc1 on the concatenated input.
    h = jnp.dot(x1_ref[...], w1a_ref[...], preferred_element_type=jnp.float32)
    h = h + jnp.dot(x2_ref[...], w1b_ref[...], preferred_element_type=jnp.float32)
    h = jnp.maximum(h + b1_ref[...], 0.0)              # relu
    # TODO(synk): dropout is identity at inference; training-mode dropout would
    # need pltpu.prng_seed / prng_random_bits.
    # fc2: [TB,H] @ [H,1] is a degenerate matmul -> VPU multiply + XLU reduce.
    z = jnp.sum(h * w2_ref[...], axis=-1, keepdims=True) + b2_ref[0, 0]
    o_ref[...] = jax.nn.sigmoid(z)


def distance_classifier(input1, input2, w1, b1, w2, b2):
    """input1: [B, D1], input2: [B, D2]; w1: [D1+D2, H] (pre-transposed, i.e.
    fc1.weight.T), b1: [1, H], w2: [H, 1] (fc2.weight.T), b2: [1, 1]."""
    input1 = input1.astype(jnp.float32)
    input2 = input2.astype(jnp.float32)
    B, D1 = input1.shape
    _, D2 = input2.shape
    D = D1 + D2
    H = w1.shape[1]

    # Split fc1 weights so the kernel never needs the concatenated activation.
    w1a = w1[:D1].astype(jnp.float32)
    w1b = w1[D1:].astype(jnp.float32)
    b1r = b1.reshape(1, H).astype(jnp.float32)
    w2r = w2.reshape(1, H).astype(jnp.float32)          # row vector for VPU fc2
    b2s = b2.reshape(1, 1).astype(jnp.float32)          # SMEM scalar

    tb = _pick_batch_tile(B, D)
    b_pad = _round_up(B, tb)
    if b_pad != B:
        pad = b_pad - B
        input1 = jnp.pad(input1, ((0, pad), (0, 0)))
        input2 = jnp.pad(input2, ((0, pad), (0, 0)))

    grid = (b_pad // tb,)

    # Explicit VMEM budget: double-buffered input/output tiles + resident
    # weights + headroom, capped at 32 MiB (valid on every TPU generation).
    tile_bytes = tb * (D1 + D2 + 1) * 4
    weight_bytes = (D * H + 2 * H + 8 * 128) * 4
    vmem_limit = min(max(2 * tile_bytes + weight_bytes + (2 << 20), 4 << 20),
                     32 << 20)

    cost = pl.CostEstimate(
        flops=2 * b_pad * D * H + 3 * b_pad * H,
        transcendentals=b_pad,                          # one sigmoid exp per row
        bytes_accessed=(b_pad * (D + 1) + D * H + 2 * H + 1) * 4,
    )

    out = pl.pallas_call(
        _distance_classifier_kernel,
        out_shape=jax.ShapeDtypeStruct((b_pad, 1), jnp.float32),
        grid=grid,
        in_specs=[
            pl.BlockSpec((tb, D1), lambda i: (i, 0)),   # streamed input1 tiles
            pl.BlockSpec((tb, D2), lambda i: (i, 0)),   # streamed input2 tiles
            pl.BlockSpec((D1, H), lambda i: (0, 0)),    # weights stay resident
            pl.BlockSpec((D2, H), lambda i: (0, 0)),
            pl.BlockSpec((1, H), lambda i: (0, 0)),
            pl.BlockSpec((1, H), lambda i: (0, 0)),
            pl.BlockSpec(memory_space=pltpu.MemorySpace.SMEM),
        ],
        out_specs=pl.BlockSpec((tb, 1), lambda i: (i, 0)),
        compiler_params=pltpu.CompilerParams(
            dimension_semantics=("parallel",),          # 2-TC sharding on v7x
            vmem_limit_bytes=vmem_limit,
        ),
        cost_estimate=cost,
    )(input1, input2, w1a, w1b, b1r, w2r, b2s)

    return out[:B]


def _reference(input1, input2, w1, b1, w2, b2):
    x = jnp.concatenate([input1, input2], axis=1).astype(jnp.float32)
    h = jnp.maximum(x @ w1 + b1, 0.0)
    return jax.nn.sigmoid(h @ w2 + b2)


if __name__ == "__main__":
    # Small shapes: batch=2, each input has 16 features -> input_size=32,
    # hidden_size=32.
    B, D1, D2, H = 2, 16, 16, 32
    D = D1 + D2

    key = jax.random.PRNGKey(0)
    k_in1, k_in2, k_w1, k_b1, k_w2, k_b2 = jax.random.split(key, 6)

    input1 = jax.random.normal(k_in1, (B, D1), dtype=jnp.float32)
    input2 = jax.random.normal(k_in2, (B, D2), dtype=jnp.float32)

    # Deterministic "Linear" parameter init (PyTorch-like uniform fan-in scale),
    # stored pre-transposed as [in, out].
    w1 = jax.random.uniform(k_w1, (D, H), jnp.float32, -1.0, 1.0) / jnp.sqrt(D)
    b1 = jax.random.uniform(k_b1, (1, H), jnp.float32, -1.0, 1.0) / jnp.sqrt(D)
    w2 = jax.random.uniform(k_w2, (H, 1), jnp.float32, -1.0, 1.0) / jnp.sqrt(H)
    b2 = jax.random.uniform(k_b2, (1, 1), jnp.float32, -1.0, 1.0) / jnp.sqrt(H)

    out = distance_classifier(input1, input2, w1, b1, w2, b2)
    out = jax.block_until_ready(out)

    ref = _reference(input1, input2, w1, b1, w2, b2)
    assert out.shape == (B, 1)
    assert jnp.allclose(out, ref, atol=1e-5, rtol=1e-5), "mismatch vs reference"

    print("KERNEL_OK")
</pallas_src>

<mosaic_0001>
module attributes {stable_mosaic.version = 11 : i64} {
  func.func @_distance_classifier_kernel(%arg0: i32, %arg1: memref<8x16xf32, #tpu.memory_space<vmem>>, %arg2: memref<8x16xf32, #tpu.memory_space<vmem>>, %arg3: memref<16x32xf32, #tpu.memory_space<vmem>>, %arg4: memref<16x32xf32, #tpu.memory_space<vmem>>, %arg5: memref<1x32xf32, #tpu.memory_space<vmem>>, %arg6: memref<1x32xf32, #tpu.memory_space<vmem>>, %arg7: memref<1x1xf32, #tpu.memory_space<smem>>, %arg8: memref<8x1xf32, #tpu.memory_space<vmem>>) attributes {dimension_semantics = [#tpu.dimension_semantics<parallel>], iteration_bounds = array<i64: 1>, scalar_prefetch = 0 : i64, scratch_operands = 0 : i64, tpu.core_type = #tpu.core_type<tc>, window_params = [{transform_indices = @transform_0, window_bounds = array<i64: 8, 16>}, {transform_indices = @transform_1, window_bounds = array<i64: 8, 16>}, {pipeline_mode = #tpu.pipeline_mode<synchronous>, transform_indices = @transform_2, window_bounds = array<i64: 16, 32>}, {pipeline_mode = #tpu.pipeline_mode<synchronous>, transform_indices = @transform_3, window_bounds = array<i64: 16, 32>}, {pipeline_mode = #tpu.pipeline_mode<synchronous>, transform_indices = @transform_4, window_bounds = array<i64: 1, 32>}, {pipeline_mode = #tpu.pipeline_mode<synchronous>, transform_indices = @transform_5, window_bounds = array<i64: 1, 32>}, {transform_indices = @transform_6, window_bounds = array<i64: 1, 1>}, {transform_indices = @transform_7, window_bounds = array<i64: 8, 1>}]} {
    %c0 = arith.constant 0 : index
    %c0_0 = arith.constant 0 : index
    %0 = vector.load %arg1[%c0, %c0_0] : memref<8x16xf32, #tpu.memory_space<vmem>>, vector<8x16xf32>
    %c0_1 = arith.constant 0 : index
    %c0_2 = arith.constant 0 : index
    %1 = vector.load %arg3[%c0_1, %c0_2] : memref<16x32xf32, #tpu.memory_space<vmem>>, vector<16x32xf32>
    %cst = arith.constant dense<0.000000e+00> : vector<8x32xf32>
    %2 = tpu.matmul %0, %1, %cst {dimension_numbers = #tpu.dot_dimension_numbers<[1], [0], [0], [1], [0, 0, 1, 1], [], []>} : vector<8x16xf32>, vector<16x32xf32>, vector<8x32xf32> -> vector<8x32xf32>
    %c0_3 = arith.constant 0 : index
    %c0_4 = arith.constant 0 : index
    %3 = vector.load %arg2[%c0_3, %c0_4] : memref<8x16xf32, #tpu.memory_space<vmem>>, vector<8x16xf32>
    %c0_5 = arith.constant 0 : index
    %c0_6 = arith.constant 0 : index
    %4 = vector.load %arg4[%c0_5, %c0_6] : memref<16x32xf32, #tpu.memory_space<vmem>>, vector<16x32xf32>
    %cst_7 = arith.constant dense<0.000000e+00> : vector<8x32xf32>
    %5 = tpu.matmul %3, %4, %cst_7 {dimension_numbers = #tpu.dot_dimension_numbers<[1], [0], [0], [1], [0, 0, 1, 1], [], []>} : vector<8x16xf32>, vector<16x32xf32>, vector<8x32xf32> -> vector<8x32xf32>
    %6 = arith.addf %2, %5 : vector<8x32xf32>
    %c0_8 = arith.constant 0 : index
    %c0_9 = arith.constant 0 : index
    %7 = vector.load %arg5[%c0_8, %c0_9] : memref<1x32xf32, #tpu.memory_space<vmem>>, vector<1x32xf32>
    %8 = vector.broadcast %7 : vector<1x32xf32> to vector<8x32xf32>
    %9 = arith.addf %6, %8 : vector<8x32xf32>
    %cst_10 = arith.constant 0.000000e+00 : f32
    %10 = vector.broadcast %cst_10 : f32 to vector<8x32xf32>
    %11 = arith.maximumf %9, %10 : vector<8x32xf32>
    %c0_11 = arith.constant 0 : index
    %c0_12 = arith.constant 0 : index
    %12 = vector.load %arg6[%c0_11, %c0_12] : memref<1x32xf32, #tpu.memory_space<vmem>>, vector<1x32xf32>
    %13 = vector.broadcast %12 : vector<1x32xf32> to vector<8x32xf32>
    %14 = arith.mulf %11, %13 : vector<8x32xf32>
    %cst_13 = arith.constant dense<0.000000e+00> : vector<8xf32>
    %15 = vector.multi_reduction <add>, %14, %cst_13 [1] : vector<8x32xf32> to vector<8xf32>
    %16 = vector.shape_cast %15 : vector<8xf32> to vector<8x1xf32>
    %c0_14 = arith.constant 0 : index
    %c0_15 = arith.constant 0 : index
    %17 = memref.load %arg7[%c0_14, %c0_15] : memref<1x1xf32, #tpu.memory_space<smem>>
    %18 = vector.broadcast %17 : f32 to vector<8x1xf32>
    %19 = arith.addf %16, %18 : vector<8x1xf32>
    %20 = arith.negf %19 : vector<8x1xf32>
    %21 = math.exp %20 : vector<8x1xf32>
    %cst_16 = arith.constant 1.000000e+00 : f32
    %22 = vector.broadcast %cst_16 : f32 to vector<8x1xf32>
    %23 = arith.addf %22, %21 : vector<8x1xf32>
    %24 = arith.divf %22, %23 : vector<8x1xf32>
    %c0_17 = arith.constant 0 : index
    %c0_18 = arith.constant 0 : index
    %25 = vector.load %arg8[%c0_17, %c0_18] : memref<8x1xf32, #tpu.memory_space<vmem>>, vector<8x1xf32>
    tpu.vector_store %arg8[%c0_17, %c0_18], %24 {strides = array<i32>} : memref<8x1xf32, #tpu.memory_space<vmem>>, vector<8x1xf32>,
    return
  }
  func.func @transform_0(%arg0: i32) -> (i32, i32) {
    %c0_i32 = arith.constant 0 : i32
    %c0_i32_0 = arith.constant 0 : i32
    return %arg0, %c0_i32 : i32, i32
  }
  func.func @transform_1(%arg0: i32) -> (i32, i32) {
    %c0_i32 = arith.constant 0 : i32
    %c0_i32_0 = arith.constant 0 : i32
    return %arg0, %c0_i32 : i32, i32
  }
  func.func @transform_2(%arg0: i32) -> (i32, i32) {
    %c0_i32 = arith.constant 0 : i32
    %c0_i32_0 = arith.constant 0 : i32
    %c0_i32_1 = arith.constant 0 : i32
    return %c0_i32, %c0_i32_0 : i32, i32
  }
  func.func @transform_3(%arg0: i32) -> (i32, i32) {
    %c0_i32 = arith.constant 0 : i32
    %c0_i32_0 = arith.constant 0 : i32
    %c0_i32_1 = arith.constant 0 : i32
    return %c0_i32, %c0_i32_0 : i32, i32
  }
  func.func @transform_4(%arg0: i32) -> (i32, i32) {
    %c0_i32 = arith.constant 0 : i32
    %c0_i32_0 = arith.constant 0 : i32
    %c0_i32_1 = arith.constant 0 : i32
    return %c0_i32, %c0_i32_0 : i32, i32
  }
  func.func @transform_5(%arg0: i32) -> (i32, i32) {
    %c0_i32 = arith.constant 0 : i32
    %c0_i32_0 = arith.constant 0 : i32
    %c0_i32_1 = arith.constant 0 : i32
    return %c0_i32, %c0_i32_0 : i32, i32
  }
  func.func @transform_6(%arg0: i32) -> (i32, i32) {
    %c0_i32 = arith.constant 0 : i32
    %c0_i32_0 = arith.constant 0 : i32
    %c0_i32_1 = arith.constant 0 : i32
    return %c0_i32, %c0_i32_0 : i32, i32
  }
  func.func @transform_7(%arg0: i32) -> (i32, i32) {
    %c0_i32 = arith.constant 0 : i32
    %c0_i32_0 = arith.constant 0 : i32
    return %arg0, %c0_i32 : i32, i32
  }
}

</mosaic_0001>

<llo_original>
// kernel: tpu_custom_call.1
$region0: #{tpu_custom_call.1}
  #allocation0 [shape = 'u32[]', space=smem, size = 0x4, offset = 0x4, fixed_abs, tag = 'smem constant byte address 0x4 - core index']
  #allocation1 [shape = 'u32[144,128]{1,0:T(1,128)}', space=vmem, size = 0x12000, scoped, tag = 'internal scratch']
  #allocation2 [shape = 'f32[1,1]{1,0:T(1,128)S(6)}', space=smem, size = 0x200, scoped, tag = 'scoped memory for tpu_custom_call.1']
  %s0 = inlined_call_operand.hbm [shape: f32[8,16], index: 0, kind: input, shape index: {}]
  %s1 = inlined_call_operand.hbm [shape: f32[8,16], index: 1, kind: input, shape index: {}]
  %s2 = inlined_call_operand.hbm [shape: f32[16,32], index: 2, kind: input, shape index: {}]
  %s3 = inlined_call_operand.hbm [shape: f32[16,32], index: 3, kind: input, shape index: {}]
  %s4 = inlined_call_operand.vmem [shape: f32[1,32], index: 4, kind: input, shape index: {}]
  %s5 = inlined_call_operand.vmem [shape: f32[1,32], index: 5, kind: input, shape index: {}]
  %s6 = inlined_call_operand.<no memory space> [shape: f32[1,1], index: 6, kind: input, shape index: {}]
  %s7 = inlined_call_operand.vmem [shape: f32[8,1], index: 7, kind: output, shape index: {}]
  %s8 = sld [smem:[#allocation0]]
  $region54: #{tpu_custom_call.1} parent=0
    _
  %s10 = ssub.s32 1, %s8
  %s11 = scalar_select 0, %s10, %s8
  %12 = sst [smem:[#allocation2]] %s6
  $region1: #{tpu_custom_call.1} parent=0
    #allocation3 [shape = 'u8[4096]{0}', space=vmem, size = 0x1000, scoped, tag = 'input window, operand 0, single buffered']
    #allocation4 [shape = 's32[1]{0}', space=sflag, size = 0x4, scoped, tag = 'scoped memory for tpu_custom_call.1']
    #allocation5 [shape = 'u8[4096]{0}', space=vmem, size = 0x1000, scoped, tag = 'input window, operand 1, single buffered']
    #allocation6 [shape = 's32[1]{0}', space=sflag, size = 0x4, scoped, tag = 'scoped memory for tpu_custom_call.1']
    #allocation7 [shape = 'u8[8192]{0}', space=vmem, size = 0x2000, scoped, tag = 'input window, operand 2, single buffered']
    #allocation8 [shape = 'u8[8192]{0}', space=vmem, size = 0x2000, scoped, tag = 'input window, operand 3, single buffered']
    #allocation9 [shape = 's32[1]{0}', space=sflag, size = 0x4, scoped, tag = 'scoped memory for tpu_custom_call.1']
    %13 = vsyncpa [#allocation4], 0
    %14 = vsyncpa [#allocation6], 0
    %15 = vsyncpa [#allocation9], 0
    // Predicated region
    $region2: #{tpu_custom_call.1} parent=1 // pred_check
      _
    $region3: #{tpu_custom_call.1} parent=1 // pred_check_branch
      %17 = sbr.rel (0) target = $region5
    $region4: #{tpu_custom_call.1} parent=1 // pred_region
      %s19 = ssub.s32 128, 128
      %20 = vsyncadd [#allocation4], %s19
      %s22 = sshll.u32 [#allocation3], 4
      %s23 = int_to_ptr.vmem [resolvable:$true] %s22
      %25 = dma.hbm_to_vmem [thread:$0]  %s0, 128, %s23, [#allocation4]
    $region5: #{tpu_custom_call.1} parent=1 // pred_fallthru
      _
    // Predicated region
    $region6: #{tpu_custom_call.1} parent=1 // pred_check
      _
    $region7: #{tpu_custom_call.1} parent=1 // pred_check_branch
      %27 = sbr.rel (0) target = $region9
    $region8: #{tpu_custom_call.1} parent=1 // pred_region
      %s29 = ssub.s32 128, 128
      %30 = vsyncadd [#allocation6], %s29
      %s32 = sshll.u32 [#allocation5], 4
      %s33 = int_to_ptr.vmem [resolvable:$true] %s32
      %35 = dma.hbm_to_vmem [thread:$0]  %s1, 128, %s33, [#allocation6]
    $region9: #{tpu_custom_call.1} parent=1 // pred_fallthru
      _
    // Predicated region
    $region10: #{tpu_custom_call.1} parent=1 // pred_check
      _
    $region11: #{tpu_custom_call.1} parent=1 // pred_check_branch
      %37 = sbr.rel (0) target = $region13
    $region12: #{tpu_custom_call.1} parent=1 // pred_region
      %s39 = ssub.s32 256, 256
      %40 = vsyncadd [#allocation6], %s39
      %s41 = sshll.u32 [#allocation7], 4
      %s42 = int_to_ptr.vmem [resolvable:$true] %s41
      %47 = dma.hbm_to_vmem [thread:$0]  %s2, 256, %s42, [#allocation6], 128, 128, 8
    $region13: #{tpu_custom_call.1} parent=1 // pred_fallthru
      _
    // Predicated region
    $region14: #{tpu_custom_call.1} parent=1 // pred_check
      _
    $region15: #{tpu_custom_call.1} parent=1 // pred_check_branch
      %49 = sbr.rel (0) target = $region17
    $region16: #{tpu_custom_call.1} parent=1 // pred_region
      %s51 = ssub.s32 256, 256
      %52 = vsyncadd [#allocation9], %s51
      %s53 = sshll.u32 [#allocation8], 4
      %s54 = int_to_ptr.vmem [resolvable:$true] %s53
      %59 = dma.hbm_to_vmem [thread:$0]  %s3, 256, %s54, [#allocation9], 128, 128, 8
    $region17: #{tpu_custom_call.1} parent=1 // pred_fallthru
      _
    // Predicated region
    $region18: #{tpu_custom_call.1} parent=1 // pred_check
      _
    $region19: #{tpu_custom_call.1} parent=1 // pred_check_branch
      %61 = sbr.rel (0) target = $region21
    $region20: #{tpu_custom_call.1} parent=1 // pred_region
      _
    $region21: #{tpu_custom_call.1} parent=1 // pred_fallthru
      _
    // Predicated region
    $region22: #{tpu_custom_call.1} parent=1 // pred_check
      _
    $region23: #{tpu_custom_call.1} parent=1 // pred_check_branch
      %63 = sbr.rel (0) target = $region25
    $region24: #{tpu_custom_call.1} parent=1 // pred_region
      _
    $region25: #{tpu_custom_call.1} parent=1 // pred_fallthru
      _
    // Predicated region
    $region26: #{tpu_custom_call.1} parent=1 // pred_check
      _
    $region27: #{tpu_custom_call.1} parent=1 // pred_check_branch
      %65 = sbr.rel (0) target = $region29
    $region28: #{tpu_custom_call.1} parent=1 // pred_region
      _
    $region29: #{tpu_custom_call.1} parent=1 // pred_fallthru
      _
    // Predicated region
    $region30: #{tpu_custom_call.1} parent=1 // pred_check
      _
    $region31: #{tpu_custom_call.1} parent=1 // pred_check_branch
      %67 = sbr.rel (0) target = $region33
    $region32: #{tpu_custom_call.1} parent=1 // pred_region
      %68 = dma.done [#allocation4], 128
    $region33: #{tpu_custom_call.1} parent=1 // pred_fallthru
      _
    // Predicated region
    $region34: #{tpu_custom_call.1} parent=1 // pred_check
      _
    $region35: #{tpu_custom_call.1} parent=1 // pred_check_branch
      %70 = sbr.rel (0) target = $region37
    $region36: #{tpu_custom_call.1} parent=1 // pred_region
      %71 = dma.done [#allocation6], 128
    $region37: #{tpu_custom_call.1} parent=1 // pred_fallthru
      _
    // Predicated region
    $region38: #{tpu_custom_call.1} parent=1 // pred_check
      _
    $region39: #{tpu_custom_call.1} parent=1 // pred_check_branch
      %73 = sbr.rel (0) target = $region41
    $region40: #{tpu_custom_call.1} parent=1 // pred_region
      %74 = dma.done [#allocation6], 256
    $region41: #{tpu_custom_call.1} parent=1 // pred_fallthru
      _
    // Predicated region
    $region42: #{tpu_custom_call.1} parent=1 // pred_check
      _
    $region43: #{tpu_custom_call.1} parent=1 // pred_check_branch
      %76 = sbr.rel (0) target = $region45
    $region44: #{tpu_custom_call.1} parent=1 // pred_region
      %77 = dma.done [#allocation9], 256
    $region45: #{tpu_custom_call.1} parent=1 // pred_fallthru
      _
    %v78 = vld [vmem:[#allocation3] sm:$0xff]
    %v79 = vld [vmem:[#allocation7] sm:$0xff]
    %v80 = vld [vmem:[#allocation7 + $0x8] sm:$0xff]
    %v81 = vld [vmem:[#allocation5] sm:$0xff]
    %v82 = vld [vmem:[#allocation8] sm:$0xff]
    %v83 = vld [vmem:[#allocation8 + $0x8] sm:$0xff]
    %vm84 = vcmask 130048
    %v86 = vsel %vm84, %v81, 0
    %88 = vmatprep.subr.mxu0 0.0
    %89 = vmatpush1.msra.mxu0 %v82
    %90 = vmatprep.subr.mxu0 0.0
    %91 = vmatpush1.msra.mxu0 %v83
    %92 = vmatprep.subr.mxu0 0.0
    %93 = vmatpush1.msra.mxu0 0.0
    %94 = vmatprep.subr.mxu0 0.0
    %95 = vmatpush1.msra.mxu0 0.0
    %96 = vmatprep.subr.mxu0 0.0
    %97 = vmatpush1.msra.mxu0 0.0
    %98 = vmatprep.subr.mxu0 0.0
    %99 = vmatpush1.msra.mxu0 0.0
    %100 = vmatprep.subr.mxu0 0.0
    %101 = vmatpush1.msra.mxu0 0.0
    %102 = vmatprep.subr.mxu0 0.0
    %103 = vmatpush1.msra.mxu0 0.0
    %104 = vmatprep.subr.mxu0 0.0
    %105 = vmatpush1.msra.mxu0 0.0
    %106 = vmatprep.subr.mxu0 0.0
    %107 = vmatpush1.msra.mxu0 0.0
    %108 = vmatprep.subr.mxu0 0.0
    %109 = vmatpush1.msra.mxu0 0.0
    %110 = vmatprep.subr.mxu0 0.0
    %111 = vmatpush1.msra.mxu0 0.0
    %112 = vmatprep.subr.mxu0 0.0
    %113 = vmatpush1.msra.mxu0 0.0
    %114 = vmatprep.subr.mxu0 0.0
    %115 = vmatpush1.msra.mxu0 0.0
    %116 = vmatprep.subr.mxu0 0.0
    %117 = vmatpush1.msra.mxu0 0.0
    %118 = vmatprep.subr.mxu0 0.0
    %119 = vmatpush1.msra.mxu0 0.0
    %120 = vmatprep.subr.mxu0 0.0
    %121 = vmatpush1.msra.mxu0 0.0
    %122 = vmatprep.subr.mxu0 0.0
    %123 = vmatpush1.msra.mxu0 0.0
    %124 = vmatprep.subr.mxu0 0.0
    %125 = vmatpush1.msra.mxu0 0.0
    %126 = vmatprep.subr.mxu0 0.0
    %127 = vmatpush1.msra.mxu0 0.0
    %128 = vmatprep.subr.mxu0 0.0
    %129 = vmatpush1.msra.mxu0 0.0
    %130 = vmatprep.subr.mxu0 0.0
    %131 = vmatpush1.msra.mxu0 0.0
    %132 = vmatprep.subr.mxu0 0.0
    %133 = vmatpush1.msra.mxu0 0.0
    %134 = vmatprep.subr.mxu0 0.0
    %135 = vmatpush1.msra.mxu0 0.0
    %136 = vmatprep.subr.mxu0 0.0
    %137 = vmatpush1.msra.mxu0 0.0
    %138 = vmatprep.subr.mxu0 0.0
    %139 = vmatpush1.msra.mxu0 0.0
    %140 = vmatprep.subr.mxu0 0.0
    %141 = vmatpush1.msra.mxu0 0.0
    %142 = vmatprep.subr.mxu0 0.0
    %143 = vmatpush1.msra.mxu0 0.0
    %144 = vmatprep.subr.mxu0 0.0
    %145 = vmatpush1.msra.mxu0 0.0
    %146 = vmatprep.subr.mxu0 0.0
    %147 = vmatpush1.msra.mxu0 0.0
    %148 = vmatprep.subr.mxu0 0.0
    %149 = vmatpush1.msra.mxu0 0.0
    %150 = vmatprep.subr.mxu0 0.0
    %151 = vmatpush1.msra.mxu0 0.0
    %152 = vmatprep.mubr.f32.mxu0 0.0
    %153 = vmatmul.mubr.f32.gmra.mrb[0].mxu0 %v86
    %v154 = vpop.f32.mrb[0].mxu0
    %v155 = vadd.f32 0.0, %v154
    %v156 = vpop.f32.mrb[0].mxu0
    %157 = vdwg.mxu0
    %v159 = vsel %vm84, %v78, 0
    %161 = vmatprep.subr.mxu0 0.0
    %162 = vmatpush1.msra.mxu0 %v79
    %163 = vmatprep.subr.mxu0 0.0
    %164 = vmatpush1.msra.mxu0 %v80
    %165 = vmatprep.subr.mxu0 0.0
    %166 = vmatpush1.msra.mxu0 0.0
    %167 = vmatprep.subr.mxu0 0.0
    %168 = vmatpush1.msra.mxu0 0.0
    %169 = vmatprep.subr.mxu0 0.0
    %170 = vmatpush1.msra.mxu0 0.0
    %171 = vmatprep.subr.mxu0 0.0
    %172 = vmatpush1.msra.mxu0 0.0
    %173 = vmatprep.subr.mxu0 0.0
    %174 = vmatpush1.msra.mxu0 0.0
    %175 = vmatprep.subr.mxu0 0.0
    %176 = vmatpush1.msra.mxu0 0.0
    %177 = vmatprep.subr.mxu0 0.0
    %178 = vmatpush1.msra.mxu0 0.0
    %179 = vmatprep.subr.mxu0 0.0
    %180 = vmatpush1.msra.mxu0 0.0
    %181 = vmatprep.subr.mxu0 0.0
    %182 = vmatpush1.msra.mxu0 0.0
    %183 = vmatprep.subr.mxu0 0.0
    %184 = vmatpush1.msra.mxu0 0.0
    %185 = vmatprep.subr.mxu0 0.0
    %186 = vmatpush1.msra.mxu0 0.0
    %187 = vmatprep.subr.mxu0 0.0
    %188 = vmatpush1.msra.mxu0 0.0
    %189 = vmatprep.subr.mxu0 0.0
    %190 = vmatpush1.msra.mxu0 0.0
    %191 = vmatprep.subr.mxu0 0.0
    %192 = vmatpush1.msra.mxu0 0.0
    %193 = vmatprep.subr.mxu0 0.0
    %194 = vmatpush1.msra.mxu0 0.0
    %195 = vmatprep.subr.mxu0 0.0
    %196 = vmatpush1.msra.mxu0 0.0
    %197 = vmatprep.subr.mxu0 0.0
    %198 = vmatpush1.msra.mxu0 0.0
    %199 = vmatprep.subr.mxu0 0.0
    %200 = vmatpush1.msra.mxu0 0.0
    %201 = vmatprep.subr.mxu0 0.0
    %202 = vmatpush1.msra.mxu0 0.0
    %203 = vmatprep.subr.mxu0 0.0
    %204 = vmatpush1.msra.mxu0 0.0
    %205 = vmatprep.subr.mxu0 0.0
    %206 = vmatpush1.msra.mxu0 0.0
    %207 = vmatprep.subr.mxu0 0.0
    %208 = vmatpush1.msra.mxu0 0.0
    %209 = vmatprep.subr.mxu0 0.0
    %210 = vmatpush1.msra.mxu0 0.0
    %211 = vmatprep.subr.mxu0 0.0
    %212 = vmatpush1.msra.mxu0 0.0
    %213 = vmatprep.subr.mxu0 0.0
    %214 = vmatpush1.msra.mxu0 0.0
    %215 = vmatprep.subr.mxu0 0.0
    %216 = vmatpush1.msra.mxu0 0.0
    %217 = vmatprep.subr.mxu0 0.0
    %218 = vmatpush1.msra.mxu0 0.0
    %219 = vmatprep.subr.mxu0 0.0
    %220 = vmatpush1.msra.mxu0 0.0
    %221 = vmatprep.subr.mxu0 0.0
    %222 = vmatpush1.msra.mxu0 0.0
    %223 = vmatprep.subr.mxu0 0.0
    %224 = vmatpush1.msra.mxu0 0.0
    %225 = vmatprep.mubr.f32.mxu0 0.0
    %226 = vmatmul.mubr.f32.gmra.mrb[0].mxu0 %v159
    %v227 = vpop.f32.mrb[0].mxu0
    %v228 = vadd.f32 %v155, %v227
    %v229 = vpop.f32.mrb[0].mxu0
    %230 = vdwg.mxu0
    %v231 = vld [vmem:[%s4] sm:$0x1]
    %v233 = vlaneseq
    %v234 = vshrl.u32 %v233, 7
    %v235 = vsub.s32 0, %v234
    %v236 = vrot.slane %v231, %v235
    %v238 = vadd.f32 %v228, %v236
    %v239 = vmax.f32 %v238, 0.0
    %v240 = vld [vmem:[%s5] sm:$0x1]
    %v242 = vlaneseq
    %v243 = vshrl.u32 %v242, 7
    %v244 = vsub.s32 0, %v243
    %v245 = vrot.slane %v240, %v244
    %v247 = vmul.f32 %v239, %v245
    %vm248 = vcmask 261120
    %v249 = vsel %vm248, %v247, 0.0
    %250 = vadd.xlane.f32.xlu0 %v249
    %v251 = vpop.xlane.xlu0 %250
    %s252 = sld [smem:[#allocation2]]
    %v253 = vstv %s252
    %v254 = vadd.f32 %v251, %v253
    %v255 = vxor.u32 %v254, 2147483648
    %v256 = vmul.f32 %v255, 1.442695
    %v257 = vpow.pop %v256
    %v258 = vadd.f32 %v257, 1.0
    %v259 = vrcp.pop %v258
    %v260 = vmul.f32 1.0, %v259
    %vm261 = vcmask 7168
    %262 = vst.msk [vmem:[%s7] sm:$0xff] %vm261, %v260
    // Predicated region
    $region46: #{tpu_custom_call.1} parent=1 // pred_check
      _
    $region47: #{tpu_custom_call.1} parent=1 // pred_check_branch
      %264 = sbr.rel (0) target = $region49
    $region48: #{tpu_custom_call.1} parent=1 // pred_region
      _
    $region49: #{tpu_custom_call.1} parent=1 // pred_fallthru
      _
    // Predicated region
    $region50: #{tpu_custom_call.1} parent=1 // pred_check
      _
    $region51: #{tpu_custom_call.1} parent=1 // pred_check_branch
      %266 = sbr.rel (0) target = $region53
    $region52: #{tpu_custom_call.1} parent=1 // pred_region
      _
    $region53: #{tpu_custom_call.1} parent=1 // pred_fallthru
      _
    %267 = vsyncpa [#allocation4], 1
    %268 = vsyncpa [#allocation6], 1
    %269 = vsyncpa [#allocation9], 1

</llo_original>
